<compile_context>
chip_gen: v7x
topology: tpu7x:2x2x1
jax: 0.10.0
libtpu: 0.0.40
codegen_flags: <defaults>
</compile_context>

<pallas_src>
import functools

import jax
import jax.numpy as jnp
import numpy as np
from jax.experimental import pallas as pl
from jax.experimental.pallas import tpu as pltpu

BN_EPS = 1e-5
_LANE = 128
_MIB = 1024 * 1024


def _round_up(x, m):
    return ((x + m - 1) // m) * m


def _cdiv(a, b):
    return (a + b - 1) // b


def _physical_vmem_bytes():
    """Best-effort per-core VMEM query; conservative (v7x) fallback."""
    try:
        info = pltpu.get_tpu_info()
        for name in ("vmem_capacity_bytes", "vmem_size_bytes", "vmem_bytes"):
            v = getattr(info, name, None)
            if isinstance(v, int) and v > 0:
                return v
    except Exception:
        pass
    return 64 * _MIB


# ---------------------------------------------------------------------------
# Pass 1: conv tile (MXU matmul, channel-major) + per-tile channel statistics.
# ---------------------------------------------------------------------------
def _conv_stats_kernel(patches_ref, w_ref, conv_ref, stats_ref):
    # (Cpad, Kpad) @ (Kpad, TM) -> (Cpad, TM) with f32 accumulation on the MXU.
    acc = jnp.dot(w_ref[...], patches_ref[...],
                  preferred_element_type=jnp.float32)
    # bf16 intermediate: halves write + re-read HBM traffic between passes.
    conv_ref[...] = acc.astype(conv_ref.dtype)
    # Per-channel partial sums from the *f32* accumulator; only 128 B / tile.
    stats_ref[0, :, 0:1] = jnp.sum(acc, axis=1, keepdims=True)
    stats_ref[0, :, 1:2] = jnp.sum(acc * acc, axis=1, keepdims=True)


# ---------------------------------------------------------------------------
# Pass 2: folded BatchNorm (per-channel scale/shift) + LeakyReLU.
# ---------------------------------------------------------------------------
def _bn_lrelu_kernel(neg_slope, conv_ref, scale_ref, shift_ref, o_ref):
    y = conv_ref[...].astype(jnp.float32) * scale_ref[...] + shift_ref[...]
    o_ref[...] = jnp.where(y >= 0, y, neg_slope * y)


# ---------------------------------------------------------------------------
# JAX-side layout glue.
# ---------------------------------------------------------------------------
def _im2col_3d_kmajor(x_cf, k, stride, pad):
    """(Cin, N, D, H, W) -> (K, M) = (Cin*k^3, N*Do*Ho*Wo) patch matrix."""
    Cin, N, D, H, W = x_cf.shape
    Do = (D + 2 * pad - k) // stride + 1
    Ho = (H + 2 * pad - k) // stride + 1
    Wo = (W + 2 * pad - k) // stride + 1
    xp = jnp.pad(x_cf, ((0, 0), (0, 0), (pad, pad), (pad, pad), (pad, pad)))
    cols = []
    for i in range(k):
        for j in range(k):
            for l in range(k):
                cols.append(xp[:, :,
                               i:i + stride * Do:stride,
                               j:j + stride * Ho:stride,
                               l:l + stride * Wo:stride])
    # (Cin, k^3, N, Do, Ho, Wo): K order = (cin, kd, kh, kw) matches the
    # natural nn.Conv3d weight layout; M order = (n, do, ho, wo).
    patches = jnp.stack(cols, axis=1)
    return patches.reshape(Cin * k * k * k, N * Do * Ho * Wo), (Do, Ho, Wo)


def _choose_tiling(M, k_pad, c_pad, vmem_limit, tile_m_max):
    budget = int(vmem_limit * 0.7)            # headroom for Mosaic internals
    w_bytes = 4 * c_pad * k_pad               # double-buffered bf16 weight
    per_row = max(4 * k_pad + 12 * c_pad,     # pass 1: patches + conv + f32 acc
                  12 * c_pad)                 # pass 2: bf16 in + f32 out
    cap = max((budget - w_bytes) // per_row, 256)
    cap = max(_LANE, (cap // _LANE) * _LANE)
    # Keep >= 2 tiles whenever M allows it (v7x has two TensorCores).
    two_tiles = _round_up(_cdiv(M, 2), _LANE)
    tm = max(_LANE, min(cap, tile_m_max, two_tiles))
    m_pad = _round_up(M, tm)
    return tm, m_pad, m_pad // tm


def conv3d_bn_lrelu(x, weight, bias, gamma, beta, *, stride, padding, l_relu):
    """Equivalent of Conv3D.forward (training-mode BatchNorm batch stats).

    x:      (N, Cin, D, H, W)   float32
    weight: (Cout, Cin, k, k, k)
    bias, gamma, beta: (Cout,)
    returns (N, Cout, Do, Ho, Wo) float32
    """
    # The conv bias cancels exactly under training-mode batch-stat
    # normalization (mean subtraction), so it never enters the math.
    del bias
    N, Cin, D, H, W = x.shape
    Cout = weight.shape[0]
    k = weight.shape[2]

    # One small transpose + bf16 cast of the *input*; the 27x-larger patch
    # matrix is built directly in its (K, M) matmul layout, already in bf16.
    # TODO(synk): higher-effort follow-up -- implicit-GEMM pass 1 (loop the
    # k^3 taps inside the kernel over a BlockSpec-tiled padded input) would
    # remove the im2col materialization entirely.
    x_cf = jnp.transpose(x, (1, 0, 2, 3, 4)).astype(jnp.bfloat16)
    patches, (Do, Ho, Wo) = _im2col_3d_kmajor(x_cf, k, stride, padding)
    K, M = patches.shape

    k_pad = _round_up(K, _LANE)     # lane-dense contraction dim
    c_pad = _round_up(Cout, 16)     # sublane-only channel padding (bf16 tile)

    phys_vmem = _physical_vmem_bytes()
    if phys_vmem >= 100 * _MIB:     # v5e / v6e: 128 MiB physical VMEM
        vmem_limit, tile_m_max = 96 * _MIB, 8192
    else:                           # v7x (64 MiB) or unknown
        vmem_limit, tile_m_max = 52 * _MIB, 4096
    tm, m_pad, num_tiles = _choose_tiling(M, k_pad, c_pad, vmem_limit,
                                          tile_m_max)

    patches_p = jnp.pad(patches, ((0, k_pad - K), (0, m_pad - M)))
    w_p = jnp.pad(weight.astype(jnp.bfloat16).reshape(Cout, K),
                  ((0, c_pad - Cout), (0, k_pad - K)))

    cparams = pltpu.CompilerParams(
        dimension_semantics=("parallel",),
        vmem_limit_bytes=vmem_limit)

    # ---- pass 1: conv + per-tile per-channel statistics -------------------
    conv_cm, stats = pl.pallas_call(
        _conv_stats_kernel,
        out_shape=(
            jax.ShapeDtypeStruct((c_pad, m_pad), jnp.bfloat16),
            jax.ShapeDtypeStruct((num_tiles, c_pad, 2), jnp.float32),
        ),
        grid=(num_tiles,),
        in_specs=[
            pl.BlockSpec((k_pad, tm), lambda i: (0, i)),
            # Constant index map -> the small weight block stays resident.
            pl.BlockSpec((c_pad, k_pad), lambda i: (0, 0)),
        ],
        out_specs=(
            pl.BlockSpec((c_pad, tm), lambda i: (0, i)),
            pl.BlockSpec((1, c_pad, 2), lambda i: (i, 0, 0)),
        ),
        compiler_params=cparams,
    )(patches_p, w_p)

    # ---- tiny per-channel epilogue: fold BN into scale/shift --------------
    # Single-pass E[x^2] - mean^2 (clamped).  Padded M columns are exact
    # zeros, so dividing by the true M keeps the sums exact; a centered
    # two-pass would have to mask the padding and buys little at the bf16
    # conv accuracy contract.
    part = jnp.sum(stats, axis=0)                       # (c_pad, 2)
    mean = part[:, 0] / M
    var = jnp.maximum(part[:, 1] / M - mean * mean, 0.0)
    gamma_p = jnp.pad(gamma.astype(jnp.float32), (0, c_pad - Cout),
                      constant_values=1.0)
    beta_p = jnp.pad(beta.astype(jnp.float32), (0, c_pad - Cout))
    scale = gamma_p * jax.lax.rsqrt(var + BN_EPS)
    shift = beta_p - mean * scale

    # ---- pass 2: normalize + LeakyReLU -------------------------------------
    out_cm = pl.pallas_call(
        functools.partial(_bn_lrelu_kernel, float(l_relu)),
        out_shape=jax.ShapeDtypeStruct((c_pad, m_pad), jnp.float32),
        grid=(num_tiles,),
        in_specs=[
            pl.BlockSpec((c_pad, tm), lambda i: (0, i)),
            pl.BlockSpec((c_pad, 1), lambda i: (0, 0)),
            pl.BlockSpec((c_pad, 1), lambda i: (0, 0)),
        ],
        out_specs=pl.BlockSpec((c_pad, tm), lambda i: (0, i)),
        compiler_params=cparams,
    )(conv_cm, scale.reshape(c_pad, 1), shift.reshape(c_pad, 1))

    # Channel-major result -> strip padding -> NCDHW.  Cheap: only the small
    # N and Cout axes are swapped, no 128-padded lane dim is involved.
    out = out_cm[:Cout, :M].reshape(Cout, N, Do, Ho, Wo)
    return jnp.transpose(out, (1, 0, 2, 3, 4))


# ---------------------------------------------------------------------------
# Pure-JAX reference (matches the PyTorch module forward).
# ---------------------------------------------------------------------------
def _reference(x, weight, bias, gamma, beta, *, stride, padding, l_relu):
    conv = jax.lax.conv_general_dilated(
        x, weight, window_strides=(stride,) * 3,
        padding=[(padding, padding)] * 3,
        dimension_numbers=("NCDHW", "OIDHW", "NCDHW"))
    conv = conv + bias[None, :, None, None, None]
    mean = conv.mean(axis=(0, 2, 3, 4), keepdims=True)
    var = ((conv - mean) ** 2).mean(axis=(0, 2, 3, 4), keepdims=True)
    y = (conv - mean) / jnp.sqrt(var + BN_EPS)
    y = y * gamma[None, :, None, None, None] + beta[None, :, None, None, None]
    return jnp.where(y >= 0, y, l_relu * y)


if __name__ == "__main__":
    # Module config: Conv3D(ch_in, ch_out, k_size, stride, padding, l_relu)
    ch_in, ch_out = 4, 8
    k_size, stride, padding = 3, 1, 1
    l_relu = 0.2
    N, D, H, W = 2, 8, 8, 8

    key = jax.random.PRNGKey(0)
    kx, kw, kb, kg, kbe = jax.random.split(key, 5)

    x = jax.random.normal(kx, (N, ch_in, D, H, W), dtype=jnp.float32)
    weight = 0.1 * jax.random.normal(
        kw, (ch_out, ch_in, k_size, k_size, k_size), dtype=jnp.float32)
    bias = 0.1 * jax.random.normal(kb, (ch_out,), dtype=jnp.float32)
    gamma = 1.0 + 0.1 * jax.random.normal(kg, (ch_out,), dtype=jnp.float32)
    beta = 0.1 * jax.random.normal(kbe, (ch_out,), dtype=jnp.float32)

    fwd = jax.jit(functools.partial(conv3d_bn_lrelu, stride=stride,
                                    padding=padding, l_relu=l_relu))
    out = jax.block_until_ready(fwd(x, weight, bias, gamma, beta))

    ref = _reference(x, weight, bias, gamma, beta,
                     stride=stride, padding=padding, l_relu=l_relu)
    np.testing.assert_allclose(np.asarray(out), np.asarray(ref),
                               atol=5e-2, rtol=5e-2)
    assert out.shape == (N, ch_out, D, H, W)
    print("KERNEL_OK")
</pallas_src>

<mosaic_0001>
module attributes {stable_mosaic.version = 11 : i64} {
  func.func @_conv_stats_kernel(%arg0: i32, %arg1: memref<128x512xbf16, #tpu.memory_space<vmem>>, %arg2: memref<16x128xbf16, #tpu.memory_space<vmem>>, %arg3: memref<16x512xbf16, #tpu.memory_space<vmem>>, %arg4: memref<1x16x2xf32, #tpu.memory_space<vmem>>) attributes {dimension_semantics = [#tpu.dimension_semantics<parallel>], iteration_bounds = array<i64: 2>, scalar_prefetch = 0 : i64, scratch_operands = 0 : i64, tpu.core_type = #tpu.core_type<tc>, window_params = [{transform_indices = @transform_0, window_bounds = array<i64: 128, 512>}, {pipeline_mode = #tpu.pipeline_mode<synchronous>, transform_indices = @transform_1, window_bounds = array<i64: 16, 128>}, {transform_indices = @transform_2, window_bounds = array<i64: 16, 512>}, {transform_indices = @transform_3, window_bounds = array<i64: 1, 16, 2>}]} {
    %c0 = arith.constant 0 : index
    %c0_0 = arith.constant 0 : index
    %0 = vector.load %arg2[%c0, %c0_0] : memref<16x128xbf16, #tpu.memory_space<vmem>>, vector<16x128xbf16>
    %c0_1 = arith.constant 0 : index
    %c0_2 = arith.constant 0 : index
    %1 = vector.load %arg1[%c0_1, %c0_2] : memref<128x512xbf16, #tpu.memory_space<vmem>>, vector<128x512xbf16>
    %cst = arith.constant dense<0.000000e+00> : vector<16x512xf32>
    %2 = tpu.matmul %0, %1, %cst {dimension_numbers = #tpu.dot_dimension_numbers<[1], [0], [0], [1], [0, 0, 1, 1], [], []>} : vector<16x128xbf16>, vector<128x512xbf16>, vector<16x512xf32> -> vector<16x512xf32>
    %3 = arith.truncf %2 : vector<16x512xf32> to vector<16x512xbf16>
    %c0_3 = arith.constant 0 : index
    %c0_4 = arith.constant 0 : index
    %4 = vector.load %arg3[%c0_3, %c0_4] : memref<16x512xbf16, #tpu.memory_space<vmem>>, vector<16x512xbf16>
    tpu.vector_store %arg3[%c0_3, %c0_4], %3 {strides = array<i32>} : memref<16x512xbf16, #tpu.memory_space<vmem>>, vector<16x512xbf16>,
    %cst_5 = arith.constant dense<0.000000e+00> : vector<16xf32>
    %5 = vector.multi_reduction <add>, %2, %cst_5 [1] : vector<16x512xf32> to vector<16xf32>
    %6 = vector.shape_cast %5 : vector<16xf32> to vector<16x1xf32>
    %c0_6 = arith.constant 0 : index
    %c0_7 = arith.constant 0 : index
    %c0_8 = arith.constant 0 : index
    %7 = vector.load %arg4[%c0_6, %c0_7, %c0_8] : memref<1x16x2xf32, #tpu.memory_space<vmem>>, vector<1x16x1xf32>
    %8 = vector.shape_cast %7 : vector<1x16x1xf32> to vector<16x1xf32>
    %9 = vector.shape_cast %6 : vector<16x1xf32> to vector<1x16x1xf32>
    tpu.vector_store %arg4[%c0_6, %c0_7, %c0_8], %9 {strides = array<i32>} : memref<1x16x2xf32, #tpu.memory_space<vmem>>, vector<1x16x1xf32>,
    %10 = arith.mulf %2, %2 : vector<16x512xf32>
    %cst_9 = arith.constant dense<0.000000e+00> : vector<16xf32>
    %11 = vector.multi_reduction <add>, %10, %cst_9 [1] : vector<16x512xf32> to vector<16xf32>
    %12 = vector.shape_cast %11 : vector<16xf32> to vector<16x1xf32>
    %c0_10 = arith.constant 0 : index
    %c0_11 = arith.constant 0 : index
    %c1 = arith.constant 1 : index
    %13 = vector.load %arg4[%c0_10, %c0_11, %c1] : memref<1x16x2xf32, #tpu.memory_space<vmem>>, vector<1x16x1xf32>
    %14 = vector.shape_cast %13 : vector<1x16x1xf32> to vector<16x1xf32>
    %15 = vector.shape_cast %12 : vector<16x1xf32> to vector<1x16x1xf32>
    tpu.vector_store %arg4[%c0_10, %c0_11, %c1], %15 {strides = array<i32>} : memref<1x16x2xf32, #tpu.memory_space<vmem>>, vector<1x16x1xf32>,
    return
  }
  func.func @transform_0(%arg0: i32) -> (i32, i32) {
    %c0_i32 = arith.constant 0 : i32
    %c0_i32_0 = arith.constant 0 : i32
    return %c0_i32, %arg0 : i32, i32
  }
  func.func @transform_1(%arg0: i32) -> (i32, i32) {
    %c0_i32 = arith.constant 0 : i32
    %c0_i32_0 = arith.constant 0 : i32
    %c0_i32_1 = arith.constant 0 : i32
    return %c0_i32, %c0_i32_0 : i32, i32
  }
  func.func @transform_2(%arg0: i32) -> (i32, i32) {
    %c0_i32 = arith.constant 0 : i32
    %c0_i32_0 = arith.constant 0 : i32
    return %c0_i32, %arg0 : i32, i32
  }
  func.func @transform_3(%arg0: i32) -> (i32, i32, i32) {
    %c0_i32 = arith.constant 0 : i32
    %c0_i32_0 = arith.constant 0 : i32
    %c0_i32_1 = arith.constant 0 : i32
    return %arg0, %c0_i32, %c0_i32_0 : i32, i32, i32
  }
}

module attributes {stable_mosaic.version = 11 : i64} {
  func.func @_bn_lrelu_kernel(%arg0: i32, %arg1: memref<16x512xbf16, #tpu.memory_space<vmem>>, %arg2: memref<16x1xf32, #tpu.memory_space<vmem>>, %arg3: memref<16x1xf32, #tpu.memory_space<vmem>>, %arg4: memref<16x512xf32, #tpu.memory_space<vmem>>) attributes {dimension_semantics = [#tpu.dimension_semantics<parallel>], iteration_bounds = array<i64: 2>, scalar_prefetch = 0 : i64, scratch_operands = 0 : i64, tpu.core_type = #tpu.core_type<tc>, window_params = [{transform_indices = @transform_0, window_bounds = array<i64: 16, 512>}, {pipeline_mode = #tpu.pipeline_mode<synchronous>, transform_indices = @transform_1, window_bounds = array<i64: 16, 1>}, {pipeline_mode = #tpu.pipeline_mode<synchronous>, transform_indices = @transform_2, window_bounds = array<i64: 16, 1>}, {transform_indices = @transform_3, window_bounds = array<i64: 16, 512>}]} {
    %c0 = arith.constant 0 : index
    %c0_0 = arith.constant 0 : index
    %0 = vector.load %arg1[%c0, %c0_0] : memref<16x512xbf16, #tpu.memory_space<vmem>>, vector<16x512xbf16>
    %1 = arith.extf %0 : vector<16x512xbf16> to vector<16x512xf32>
    %c0_1 = arith.constant 0 : index
    %c0_2 = arith.constant 0 : index
    %2 = vector.load %arg2[%c0_1, %c0_2] : memref<16x1xf32, #tpu.memory_space<vmem>>, vector<16x1xf32>
    %3 = vector.broadcast %2 : vector<16x1xf32> to vector<16x512xf32>
    %4 = arith.mulf %1, %3 : vector<16x512xf32>
    %c0_3 = arith.constant 0 : index
    %c0_4 = arith.constant 0 : index
    %5 = vector.load %arg3[%c0_3, %c0_4] : memref<16x1xf32, #tpu.memory_space<vmem>>, vector<16x1xf32>
    %6 = vector.broadcast %5 : vector<16x1xf32> to vector<16x512xf32>
    %7 = arith.addf %4, %6 : vector<16x512xf32>
    %cst = arith.constant 0.000000e+00 : f32
    %8 = vector.broadcast %cst : f32 to vector<16x512xf32>
    %9 = arith.cmpf oge, %7, %8 : vector<16x512xf32>
    %cst_5 = arith.constant 2.000000e-01 : f32
    %10 = vector.broadcast %cst_5 : f32 to vector<16x512xf32>
    %11 = arith.mulf %10, %7 : vector<16x512xf32>
    %12 = arith.select %9, %7, %11 : vector<16x512xi1>, vector<16x512xf32>
    %c0_6 = arith.constant 0 : index
    %c0_7 = arith.constant 0 : index
    %13 = vector.load %arg4[%c0_6, %c0_7] : memref<16x512xf32, #tpu.memory_space<vmem>>, vector<16x512xf32>
    tpu.vector_store %arg4[%c0_6, %c0_7], %12 {strides = array<i32>} : memref<16x512xf32, #tpu.memory_space<vmem>>, vector<16x512xf32>,
    return
  }
  func.func @transform_0(%arg0: i32) -> (i32, i32) {
    %c0_i32 = arith.constant 0 : i32
    %c0_i32_0 = arith.constant 0 : i32
    return %c0_i32, %arg0 : i32, i32
  }
  func.func @transform_1(%arg0: i32) -> (i32, i32) {
    %c0_i32 = arith.constant 0 : i32
    %c0_i32_0 = arith.constant 0 : i32
    %c0_i32_1 = arith.constant 0 : i32
    return %c0_i32, %c0_i32_0 : i32, i32
  }
  func.func @transform_2(%arg0: i32) -> (i32, i32) {
    %c0_i32 = arith.constant 0 : i32
    %c0_i32_0 = arith.constant 0 : i32
    %c0_i32_1 = arith.constant 0 : i32
    return %c0_i32, %c0_i32_0 : i32, i32
  }
  func.func @transform_3(%arg0: i32) -> (i32, i32) {
    %c0_i32 = arith.constant 0 : i32
    %c0_i32_0 = arith.constant 0 : i32
    return %c0_i32, %arg0 : i32, i32
  }
}

</mosaic_0001>

<llo_original>
// kernel: conv3d_bn_lrelu.3
$region0: #{conv3d_bn_lrelu.3}
  #allocation0 [shape = 'u32[]', space=smem, size = 0x4, offset = 0x4, fixed_abs, tag = 'smem constant byte address 0x4 - core index']
  #allocation1 [shape = 'u32[144,128]{1,0:T(1,128)}', space=vmem, size = 0x12000, scoped, tag = 'internal scratch']
  %s0 = inlined_call_operand.vmem [shape: bf16[16,1024], index: 0, kind: input, shape index: {}]
  %s1 = inlined_call_operand.vmem [shape: f32[16,1], index: 1, kind: input, shape index: {}]
  %s2 = inlined_call_operand.vmem [shape: f32[16,1], index: 2, kind: input, shape index: {}]
  %s3 = inlined_call_operand.vmem [shape: f32[16,1024], index: 3, kind: output, shape index: {}]
  %s4 = sld [smem:[#allocation0]]
  $region87: #{conv3d_bn_lrelu.3} parent=0
    _
  %s6 = ssub.s32 1, %s4
  %s7 = scalar_select 0, %s6, %s4
  $region1: #{conv3d_bn_lrelu.3} parent=0
    #allocation2 [shape = 'u8[32768]{0}', space=vmem, size = 0x8000, scoped, tag = 'input window, operand 0']
    #allocation3 [shape = 'u8[65536]{0}', space=vmem, size = 0x10000, scoped, tag = 'output window, operand 0']
    loop: start=0, step=1, limit=4
    $region2: #{conv3d_bn_lrelu.3} parent=1 // loop_pre_header
      _
    $region3: #{conv3d_bn_lrelu.3} parent=1 // loop_header
      %s9 = sphi 0, %s13
      %p10 = scmp.ge.s32.totalorder %s9, 4
      %s19 = sphi 0, %s21
      %s22 = sphi 0, %s19
      %s23 = sphi 0, %s22
      %s39 = sphi 0, %s23
      %s43 = sphi 0, %s43
      %s45 = sphi 0, %s43
      %s46 = sphi 0, %s45
      %s60 = sphi 0, %s46
      %s64 = sphi 0, %s64
      %s66 = sphi 0, %s64
      %s67 = sphi 0, %s66
      %s81 = sphi 0, %s67
      %s87 = sphi 0, %s89
      %s90 = sphi 0, %s87
      %s91 = sphi 0, %s90
      %s107 = sphi 0, %s91
    $region4: #{conv3d_bn_lrelu.3} parent=1 // loop_header_branch
      %12 = sbr.rel (%p10) target = $region8
    $region5: #{conv3d_bn_lrelu.3} parent=1 // loop_body
      %s14 = ssub.s32 %s9, 1
      %s15 = ssub.s32 %s9, 2
      %s16 = sadd.s32 %s9, 1
      %s17 = ssub.s32 %s9, %s16
      %p18 = scmp.eq.s32.totalorder %s17, 0
      %s20 = sadd.s32 %s19, 1
      %s21 = scalar_select %p18, %s19, %s20
      %p24 = pneg %p18
      %p25 = scmp.eq.s32.totalorder %s9, 1
      %p26 = por %p24, %p25
      %p27 = scmp.ne.s32.totalorder %s19, %s22
      %p28 = scmp.eq.s32.totalorder %s9, 0
      %p29 = por %p27, %p28
      %p30 = scmp.ne.s32.totalorder %s19, %s22
      %p31 = scmp.eq.s32.totalorder %s14, 1
      %p32 = por %p30, %p31
      %p33 = scmp.ne.s32.totalorder %s22, %s23
      %p34 = scmp.eq.s32.totalorder %s14, 0
      %p35 = por %p33, %p34
      %p36 = scmp.ne.s32.totalorder %s22, %s23
      %p37 = scmp.eq.s32.totalorder %s15, 1
      %p38 = por %p36, %p37
      %p40 = scmp.ne.s32.totalorder %s23, %s39
      %p41 = scmp.eq.s32.totalorder %s15, 0
      %p42 = por %p40, %p41
      %s44 = sadd.s32 %s43, 1
      %p47 = scmp.eq.s32.totalorder %s9, 1
      %p48 = scmp.ne.s32.totalorder %s43, %s45
      %p49 = scmp.eq.s32.totalorder %s9, 0
      %p50 = por %p48, %p49
      %p51 = scmp.ne.s32.totalorder %s43, %s45
      %p52 = scmp.eq.s32.totalorder %s14, 1
      %p53 = por %p51, %p52
      %p54 = scmp.ne.s32.totalorder %s45, %s46
      %p55 = scmp.eq.s32.totalorder %s14, 0
      %p56 = por %p54, %p55
      %p57 = scmp.ne.s32.totalorder %s45, %s46
      %p58 = scmp.eq.s32.totalorder %s15, 1
      %p59 = por %p57, %p58
      %p61 = scmp.ne.s32.totalorder %s46, %s60
      %p62 = scmp.eq.s32.totalorder %s15, 0
      %p63 = por %p61, %p62
      %s65 = sadd.s32 %s64, 1
      %p68 = scmp.eq.s32.totalorder %s9, 1
      %p69 = scmp.ne.s32.totalorder %s64, %s66
      %p70 = scmp.eq.s32.totalorder %s9, 0
      %p71 = por %p69, %p70
      %p72 = scmp.ne.s32.totalorder %s64, %s66
      %p73 = scmp.eq.s32.totalorder %s14, 1
      %p74 = por %p72, %p73
      %p75 = scmp.ne.s32.totalorder %s66, %s67
      %p76 = scmp.eq.s32.totalorder %s14, 0
      %p77 = por %p75, %p76
      %p78 = scmp.ne.s32.totalorder %s66, %s67
      %p79 = scmp.eq.s32.totalorder %s15, 1
      %p80 = por %p78, %p79
      %p82 = scmp.ne.s32.totalorder %s67, %s81
      %p83 = scmp.eq.s32.totalorder %s15, 0
      %p84 = por %p82, %p83
      %s85 = ssub.s32 %s9, %s16
      %p86 = scmp.eq.s32.totalorder %s85, 0
      %s88 = sadd.s32 %s87, 1
      %s89 = scalar_select %p86, %s87, %s88
      %p92 = pneg %p86
      %p93 = scmp.eq.s32.totalorder %s9, 1
      %p94 = por %p92, %p93
      %p95 = scmp.ne.s32.totalorder %s87, %s90
      %p96 = scmp.eq.s32.totalorder %s9, 0
      %p97 = por %p95, %p96
      %p98 = scmp.ne.s32.totalorder %s87, %s90
      %p99 = scmp.eq.s32.totalorder %s14, 1
      %p100 = por %p98, %p99
      %p101 = scmp.ne.s32.totalorder %s90, %s91
      %p102 = scmp.eq.s32.totalorder %s14, 0
      %p103 = por %p101, %p102
      %p104 = scmp.ne.s32.totalorder %s90, %s91
      %p105 = scmp.eq.s32.totalorder %s15, 1
      %p106 = por %p104, %p105
      %p108 = scmp.ne.s32.totalorder %s91, %s107
      %p109 = scmp.eq.s32.totalorder %s15, 0
      %p110 = por %p108, %p109
      %p111 = scmp.le.s32.totalorder 1, %s9
      %p112 = scmp.lt.s32.totalorder %s9, 3
      %p113 = pnand %p111, %p112
      %p114 = pneg %p113
      // Predicated region
      $region9: #{conv3d_bn_lrelu.3} parent=5 // pred_check
        _
      $region10: #{conv3d_bn_lrelu.3} parent=5 // pred_check_branch
        %116 = sbr.rel (%p113) target = $region12
      $region11: #{conv3d_bn_lrelu.3} parent=5 // pred_region
        %s117 = ssub.s32 %s9, 1
        // Predicated region
        $region13: #{conv3d_bn_lrelu.3} parent=11 // pred_check
          %p118 = pneg %p56
        $region14: #{conv3d_bn_lrelu.3} parent=11 // pred_check_branch
          %120 = sbr.rel (%p118) target = $region16
        $region15: #{conv3d_bn_lrelu.3} parent=11 // pred_region
          _
        $region16: #{conv3d_bn_lrelu.3} parent=11 // pred_fallthru
          _
        // Predicated region
        $region17: #{conv3d_bn_lrelu.3} parent=11 // pred_check
          %p121 = pneg %p77
        $region18: #{conv3d_bn_lrelu.3} parent=11 // pred_check_branch
          %123 = sbr.rel (%p121) target = $region20
        $region19: #{conv3d_bn_lrelu.3} parent=11 // pred_region
          _
        $region20: #{conv3d_bn_lrelu.3} parent=11 // pred_fallthru
          _
      $region12: #{conv3d_bn_lrelu.3} parent=5 // pred_fallthru
        _
      %p124 = scmp.lt.s32.totalorder %s9, 2
      // Predicated region
      $region21: #{conv3d_bn_lrelu.3} parent=5 // pred_check
        %p125 = pneg %p124
      $region22: #{conv3d_bn_lrelu.3} parent=5 // pred_check_branch
        %127 = sbr.rel (%p125) target = $region24
      $region23: #{conv3d_bn_lrelu.3} parent=5 // pred_region
        // Predicated region
        $region25: #{conv3d_bn_lrelu.3} parent=23 // pred_check
          %p128 = pneg %p29
        $region26: #{conv3d_bn_lrelu.3} parent=23 // pred_check_branch
          %130 = sbr.rel (%p128) target = $region28
        $region27: #{conv3d_bn_lrelu.3} parent=23 // pred_region
          %s131 = sand.u32 %s19, 1
          %s132 = sand.u32 %s19, 1
          %s133 = smul.addr %s132, 32
          %s134 = scalar_lea.vmem [#allocation2], %s133
          %s135 = smul.u32 4, %s9
          %s136 = smul.addr %s135, 4
          %s137 = scalar_lea.vmem %s0, %s136
          // Predicated region
          $region29: #{conv3d_bn_lrelu.3} parent=27 // pred_check
            _
          $region30: #{conv3d_bn_lrelu.3} parent=27 // pred_check_branch
            %139 = sbr.rel (0) target = $region32
          $region31: #{conv3d_bn_lrelu.3} parent=27 // pred_region
            // Predicated region
            $region33: #{conv3d_bn_lrelu.3} parent=31 // pred_check
              _
            $region34: #{conv3d_bn_lrelu.3} parent=31 // pred_check_branch
              %141 = sbr.rel (0) target = $region36
            $region35: #{conv3d_bn_lrelu.3} parent=31 // pred_region
              loop: start=0, step=1, limit=1
              $region37: #{conv3d_bn_lrelu.3} parent=35 // loop_pre_header
                _
              $region38: #{conv3d_bn_lrelu.3} parent=35 // loop_header
                %s143 = sphi 0, %s147
                %p144 = scmp.ge.s32.totalorder %s143, 1
                %s148 = sphi %s137, %s137
                %s149 = sphi %s134, %s134
              $region39: #{conv3d_bn_lrelu.3} parent=35 // loop_header_branch
                %146 = sbr.rel (%p144) target = $region43
              $region40: #{conv3d_bn_lrelu.3} parent=35 // loop_body
                %v150 = vld [vmem:[%s148] sm:$0xff]
                %151 = vst [vmem:[%s149] sm:$0xff] %v150
                %v152 = vld [vmem:[%s148 + $0x8] sm:$0xff]
                %153 = vst [vmem:[%s149 + $0x8] sm:$0xff] %v152
                %v154 = vld [vmem:[%s148 + $0x20] sm:$0xff]
                %155 = vst [vmem:[%s149 + $0x10] sm:$0xff] %v154
                %v156 = vld [vmem:[%s148 + $0x28] sm:$0xff]
                %157 = vst [vmem:[%s149 + $0x18] sm:$0xff] %v156
              $region41: #{conv3d_bn_lrelu.3} parent=35 // loop_footer
                %s147 = sadd.s32 1, %s143
              $region42: #{conv3d_bn_lrelu.3} parent=35 // loop_footer_branch
                %142 = sbr.rel target = $region38
              $region43: #{conv3d_bn_lrelu.3} parent=35 // loop_exit
                _
            $region36: #{conv3d_bn_lrelu.3} parent=31 // pred_fallthru
              _
            // Predicated region
            $region44: #{conv3d_bn_lrelu.3} parent=31 // pred_check
              _
            $region45: #{conv3d_bn_lrelu.3} parent=31 // pred_check_branch
              %159 = sbr.rel target = $region47
            $region46: #{conv3d_bn_lrelu.3} parent=31 // pred_region
              _
            $region47: #{conv3d_bn_lrelu.3} parent=31 // pred_fallthru
              _
          $region32: #{conv3d_bn_lrelu.3} parent=27 // pred_fallthru
            _
          %160 = vnop
        $region28: #{conv3d_bn_lrelu.3} parent=23 // pred_fallthru
          _
      $region24: #{conv3d_bn_lrelu.3} parent=5 // pred_fallthru
        _
      %p161 = scmp.le.s32.totalorder 1, %s9
      %p162 = scmp.lt.s32.totalorder %s9, 3
      %p163 = pnand %p161, %p162
      %p164 = pneg %p163
      // Predicated region
      $region48: #{conv3d_bn_lrelu.3} parent=5 // pred_check
        _
      $region49: #{conv3d_bn_lrelu.3} parent=5 // pred_check_branch
        %166 = sbr.rel (%p163) target = $region51
      $region50: #{conv3d_bn_lrelu.3} parent=5 // pred_region
        %s167 = ssub.s32 %s9, 1
        %s168 = sand.u32 %s22, 1
        %s169 = sand.u32 %s22, 1
        %s170 = smul.addr %s169, 32
        %s171 = scalar_lea.vmem [#allocation2], %s170
        // Predicated region
        $region52: #{conv3d_bn_lrelu.3} parent=50 // pred_check
          %p172 = pneg %p35
        $region53: #{conv3d_bn_lrelu.3} parent=50 // pred_check_branch
          %174 = sbr.rel (%p172) target = $region55
        $region54: #{conv3d_bn_lrelu.3} parent=50 // pred_region
          _
        $region55: #{conv3d_bn_lrelu.3} parent=50 // pred_fallthru
          _
        %s175 = sand.u32 %s22, 1
        %s176 = sand.u32 %s22, 1
        %s177 = smul.addr %s176, 32
        %s178 = scalar_lea.vmem [#allocation2], %s177
        %p179 = pneg %p35
        %p180 = pneg %p32
        %p181 = pneg %p56
        %p182 = pneg %p53
        %p183 = pneg %p77
        %p184 = pneg %p74
        %p185 = pneg %p103
        %p186 = pneg %p100
        %s187 = sand.u32 %s90, 1
        %s188 = sand.u32 %s90, 1
        %s189 = smul.addr %s188, 64
        %s190 = scalar_lea.vmem [#allocation3], %s189
        %s191 = smul.u32 4, %s14
        %s192 = smul.u32 4, %s14
        %v193 = vld [vmem:[%s171] sm:$0xff]
        %v194 = vld [vmem:[%s171 + $0x8] sm:$0xff]
        %v195 = vld [vmem:[%s171 + $0x10] sm:$0xff]
        %v196 = vld [vmem:[%s171 + $0x18] sm:$0xff]
        %v197 = vunpack.c.l.bf16 %v193
        %v198 = vunpack.c.h.bf16 %v193
        %v199 = vunpack.c.l.bf16 %v194
        %v200 = vunpack.c.h.bf16 %v194
        %v201 = vunpack.c.l.bf16 %v195
        %v202 = vunpack.c.h.bf16 %v195
        %v203 = vunpack.c.l.bf16 %v196
        %v204 = vunpack.c.h.bf16 %v196
        %v205 = vld [vmem:[%s1] sm:$0xff]
        %v206 = vld [vmem:[%s1 + $0x8] sm:$0xff]
        %208 = vset.pattern.permute.xlu0 0
        %209 = vperm.xlu0 %208, %v205
        %v210 = vpop.permute.xlu0 %209
        %213 = vset.pattern.permute.xlu0 0
        %214 = vperm.xlu0 %213, %v206
        %v215 = vpop.permute.xlu0 %214
        %v217 = vmul.f32 %v197, %v210
        %v218 = vmul.f32 %v198, %v210
        %v219 = vmul.f32 %v199, %v210
        %v220 = vmul.f32 %v200, %v210
        %v221 = vmul.f32 %v201, %v215
        %v222 = vmul.f32 %v202, %v215
        %v223 = vmul.f32 %v203, %v215
        %v224 = vmul.f32 %v204, %v215
        %v225 = vld [vmem:[%s2] sm:$0xff]
        %v226 = vld [vmem:[%s2 + $0x8] sm:$0xff]
        %228 = vset.pattern.permute.xlu0 0
        %229 = vperm.xlu0 %228, %v225
        %v230 = vpop.permute.xlu0 %229
        %233 = vset.pattern.permute.xlu0 0
        %234 = vperm.xlu0 %233, %v226
        %v235 = vpop.permute.xlu0 %234
        %v237 = vadd.f32 %v217, %v230
        %v238 = vadd.f32 %v218, %v230
        %v239 = vadd.f32 %v219, %v230
        %v240 = vadd.f32 %v220, %v230
        %v241 = vadd.f32 %v221, %v235
        %v242 = vadd.f32 %v222, %v235
        %v243 = vadd.f32 %v223, %v235
        %v244 = vadd.f32 %v224, %v235
        %vm245 = vcmp.ge.f32.partialorder %v237, 0.0
        %vm246 = vcmp.ge.f32.partialorder %v238, 0.0
        %vm247 = vcmp.ge.f32.partialorder %v239, 0.0
        %vm248 = vcmp.ge.f32.partialorder %v240, 0.0
        %vm249 = vcmp.ge.f32.partialorder %v241, 0.0
        %vm250 = vcmp.ge.f32.partialorder %v242, 0.0
        %vm251 = vcmp.ge.f32.partialorder %v243, 0.0
        %vm252 = vcmp.ge.f32.partialorder %v244, 0.0
        %v253 = vmul.f32 %v237, 0.2
        %v254 = vmul.f32 %v238, 0.2
        %v255 = vmul.f32 %v239, 0.2
        %v256 = vmul.f32 %v240, 0.2
        %v257 = vmul.f32 %v241, 0.2
        %v258 = vmul.f32 %v242, 0.2
        %v259 = vmul.f32 %v243, 0.2
        %v260 = vmul.f32 %v244, 0.2
        %v261 = vsel %vm245, %v237, %v253
        %v262 = vsel %vm246, %v238, %v254
        %v263 = vsel %vm247, %v239, %v255
        %v264 = vsel %vm248, %v240, %v256
        %v265 = vsel %vm249, %v241, %v257
        %v266 = vsel %vm250, %v242, %v258
        %v267 = vsel %vm251, %v243, %v259
        %v268 = vsel %vm252, %v244, %v260
        %269 = vst [vmem:[%s190] sm:$0xff] %v261
        %270 = vst [vmem:[%s190 + $0x8] sm:$0xff] %v262
        %271 = vst [vmem:[%s190 + $0x10] sm:$0xff] %v263
        %272 = vst [vmem:[%s190 + $0x18] sm:$0xff] %v264
        %273 = vst [vmem:[%s190 + $0x20] sm:$0xff] %v265
        %274 = vst [vmem:[%s190 + $0x28] sm:$0xff] %v266
        %275 = vst [vmem:[%s190 + $0x30] sm:$0xff] %v267
        %276 = vst [vmem:[%s190 + $0x38] sm:$0xff] %v268
        %s277 = sand.u32 %s90, 1
        %s278 = sand.u32 %s90, 1
        %s279 = smul.addr %s278, 64
        %s280 = scalar_lea.vmem [#allocation3], %s279
        // Predicated region
        $region56: #{conv3d_bn_lrelu.3} parent=50 // pred_check
          %p281 = pneg %p100
        $region57: #{conv3d_bn_lrelu.3} parent=50 // pred_check_branch
          %283 = sbr.rel (%p281) target = $region59
        $region58: #{conv3d_bn_lrelu.3} parent=50 // pred_region
          %s284 = smul.u32 4, %s14
          %s285 = smul.addr %s284, 8
          %s286 = scalar_lea.vmem %s3, %s285
          // Predicated region
          $region60: #{conv3d_bn_lrelu.3} parent=58 // pred_check
            _
          $region61: #{conv3d_bn_lrelu.3} parent=58 // pred_check_branch
            %288 = sbr.rel (0) target = $region63
          $region62: #{conv3d_bn_lrelu.3} parent=58 // pred_region
            // Predicated region
            $region64: #{conv3d_bn_lrelu.3} parent=62 // pred_check
              _
            $region65: #{conv3d_bn_lrelu.3} parent=62 // pred_check_branch
              %290 = sbr.rel (0) target = $region67
            $region66: #{conv3d_bn_lrelu.3} parent=62 // pred_region
              loop: start=0, step=1, limit=1
              $region68: #{conv3d_bn_lrelu.3} parent=66 // loop_pre_header
                _
              $region69: #{conv3d_bn_lrelu.3} parent=66 // loop_header
                %s292 = sphi 0, %s296
                %p293 = scmp.ge.s32.totalorder %s292, 1
                %s297 = sphi %s280, %s280
                %s298 = sphi %s286, %s286
              $region70: #{conv3d_bn_lrelu.3} parent=66 // loop_header_branch
                %295 = sbr.rel (%p293) target = $region74
              $region71: #{conv3d_bn_lrelu.3} parent=66 // loop_body
                %v299 = vld [vmem:[%s297] sm:$0xff]
                %300 = vst [vmem:[%s298] sm:$0xff] %v299
                %v301 = vld [vmem:[%s297 + $0x8] sm:$0xff]
                %302 = vst [vmem:[%s298 + $0x8] sm:$0xff] %v301
                %v303 = vld [vmem:[%s297 + $0x10] sm:$0xff]
                %304 = vst [vmem:[%s298 + $0x10] sm:$0xff] %v303
                %v305 = vld [vmem:[%s297 + $0x18] sm:$0xff]
                %306 = vst [vmem:[%s298 + $0x18] sm:$0xff] %v305
                %v307 = vld [vmem:[%s297 + $0x20] sm:$0xff]
                %308 = vst [vmem:[%s298 + $0x40] sm:$0xff] %v307
                %v309 = vld [vmem:[%s297 + $0x28] sm:$0xff]
                %310 = vst [vmem:[%s298 + $0x48] sm:$0xff] %v309
                %v311 = vld [vmem:[%s297 + $0x30] sm:$0xff]
                %312 = vst [vmem:[%s298 + $0x50] sm:$0xff] %v311
                %v313 = vld [vmem:[%s297 + $0x38] sm:$0xff]
                %314 = vst [vmem:[%s298 + $0x58] sm:$0xff] %v313
              $region72: #{conv3d_bn_lrelu.3} parent=66 // loop_footer
                %s296 = sadd.s32 1, %s292
              $region73: #{conv3d_bn_lrelu.3} parent=66 // loop_footer_branch
                %291 = sbr.rel target = $region69
              $region74: #{conv3d_bn_lrelu.3} parent=66 // loop_exit
                _
            $region67: #{conv3d_bn_lrelu.3} parent=62 // pred_fallthru
              _
            // Predicated region
            $region75: #{conv3d_bn_lrelu.3} parent=62 // pred_check
              _
            $region76: #{conv3d_bn_lrelu.3} parent=62 // pred_check_branch
              %316 = sbr.rel target = $region78
            $region77: #{conv3d_bn_lrelu.3} parent=62 // pred_region
              _
            $region78: #{conv3d_bn_lrelu.3} parent=62 // pred_fallthru
              _
          $region63: #{conv3d_bn_lrelu.3} parent=58 // pred_fallthru
            _
          %317 = vnop
        $region59: #{conv3d_bn_lrelu.3} parent=50 // pred_fallthru
          _
      $region51: #{conv3d_bn_lrelu.3} parent=5 // pred_fallthru
        _
      %p318 = scmp.le.s32.totalorder 2, %s9
      // Predicated region
      $region79: #{conv3d_bn_lrelu.3} parent=5 // pred_check
        %p319 = pneg %p318
      $region80: #{conv3d_bn_lrelu.3} parent=5 // pred_check_branch
        %321 = sbr.rel (%p319) target = $region82
      $region81: #{conv3d_bn_lrelu.3} parent=5 // pred_region
        %s322 = ssub.s32 %s9, 2
        // Predicated region
        $region83: #{conv3d_bn_lrelu.3} parent=81 // pred_check
          %p323 = pneg %p106
        $region84: #{conv3d_bn_lrelu.3} parent=81 // pred_check_branch
          %325 = sbr.rel (%p323) target = $region86
        $region85: #{conv3d_bn_lrelu.3} parent=81 // pred_region
          %s326 = sand.u32 %s91, 1
          %s327 = sand.u32 %s91, 1
          %s328 = smul.addr %s327, 64
          %s329 = scalar_lea.vmem [#allocation3], %s328
        $region86: #{conv3d_bn_lrelu.3} parent=81 // pred_fallthru
          _
      $region82: #{conv3d_bn_lrelu.3} parent=5 // pred_fallthru
        _
    $region6: #{conv3d_bn_lrelu.3} parent=1 // loop_footer
      %s13 = sadd.s32 1, %s9
    $region7: #{conv3d_bn_lrelu.3} parent=1 // loop_footer_branch
      %8 = sbr.rel target = $region3
    $region8: #{conv3d_bn_lrelu.3} parent=1 // loop_exit
      _

// kernel: conv3d_bn_lrelu.2
$region0: #{conv3d_bn_lrelu.2}
  #allocation0 [shape = 'u32[]', space=smem, size = 0x4, offset = 0x4, fixed_abs, tag = 'smem constant byte address 0x4 - core index']
  #allocation1 [shape = 'u32[144,128]{1,0:T(1,128)}', space=vmem, size = 0x12000, scoped, tag = 'internal scratch']
  %s0 = inlined_call_operand.vmem [shape: bf16[128,1024], index: 0, kind: input, shape index: {}]
  %s1 = inlined_call_operand.vmem [shape: bf16[16,128], index: 1, kind: input, shape index: {}]
  %s2 = inlined_call_operand.vmem [shape: bf16[16,1024], index: 2, kind: output, shape index: {0}]
  %s3 = inlined_call_operand.vmem [shape: f32[2,16,2], index: 3, kind: output, shape index: {1}]
  %4 = xla_tuple %s2, %s3
  %s5 = sld [smem:[#allocation0]]
  $region91: #{conv3d_bn_lrelu.2} parent=0
    _
  %s7 = ssub.s32 1, %s5
  %s8 = scalar_select 0, %s7, %s5
  $region1: #{conv3d_bn_lrelu.2} parent=0
    #allocation2 [shape = 'u8[262144]{0}', space=vmem, size = 0x40000, scoped, tag = 'input window, operand 0']
    #allocation3 [shape = 'u8[32768]{0}', space=vmem, size = 0x8000, scoped, tag = 'output window, operand 0']
    loop: start=0, step=1, limit=4
    $region2: #{conv3d_bn_lrelu.2} parent=1 // loop_pre_header
      _
    $region3: #{conv3d_bn_lrelu.2} parent=1 // loop_header
      %s10 = sphi 0, %s14
      %p11 = scmp.ge.s32.totalorder %s10, 4
      %s20 = sphi 0, %s22
      %s23 = sphi 0, %s20
      %s24 = sphi 0, %s23
      %s40 = sphi 0, %s24
      %s44 = sphi 0, %s44
      %s46 = sphi 0, %s44
      %s47 = sphi 0, %s46
      %s61 = sphi 0, %s47
      %s67 = sphi 0, %s69
      %s70 = sphi 0, %s67
      %s71 = sphi 0, %s70
      %s87 = sphi 0, %s71
      %s93 = sphi 0, %s95
      %s96 = sphi 0, %s93
      %s97 = sphi 0, %s96
      %s113 = sphi 0, %s97
    $region4: #{conv3d_bn_lrelu.2} parent=1 // loop_header_branch
      %13 = sbr.rel (%p11) target = $region8
    $region5: #{conv3d_bn_lrelu.2} parent=1 // loop_body
      %s15 = ssub.s32 %s10, 1
      %s16 = ssub.s32 %s10, 2
      %s17 = sadd.s32 %s10, 1
      %s18 = ssub.s32 %s10, %s17
      %p19 = scmp.eq.s32.totalorder %s18, 0
      %s21 = sadd.s32 %s20, 1
      %s22 = scalar_select %p19, %s20, %s21
      %p25 = pneg %p19
      %p26 = scmp.eq.s32.totalorder %s10, 1
      %p27 = por %p25, %p26
      %p28 = scmp.ne.s32.totalorder %s20, %s23
      %p29 = scmp.eq.s32.totalorder %s10, 0
      %p30 = por %p28, %p29
      %p31 = scmp.ne.s32.totalorder %s20, %s23
      %p32 = scmp.eq.s32.totalorder %s15, 1
      %p33 = por %p31, %p32
      %p34 = scmp.ne.s32.totalorder %s23, %s24
      %p35 = scmp.eq.s32.totalorder %s15, 0
      %p36 = por %p34, %p35
      %p37 = scmp.ne.s32.totalorder %s23, %s24
      %p38 = scmp.eq.s32.totalorder %s16, 1
      %p39 = por %p37, %p38
      %p41 = scmp.ne.s32.totalorder %s24, %s40
      %p42 = scmp.eq.s32.totalorder %s16, 0
      %p43 = por %p41, %p42
      %s45 = sadd.s32 %s44, 1
      %p48 = scmp.eq.s32.totalorder %s10, 1
      %p49 = scmp.ne.s32.totalorder %s44, %s46
      %p50 = scmp.eq.s32.totalorder %s10, 0
      %p51 = por %p49, %p50
      %p52 = scmp.ne.s32.totalorder %s44, %s46
      %p53 = scmp.eq.s32.totalorder %s15, 1
      %p54 = por %p52, %p53
      %p55 = scmp.ne.s32.totalorder %s46, %s47
      %p56 = scmp.eq.s32.totalorder %s15, 0
      %p57 = por %p55, %p56
      %p58 = scmp.ne.s32.totalorder %s46, %s47
      %p59 = scmp.eq.s32.totalorder %s16, 1
      %p60 = por %p58, %p59
      %p62 = scmp.ne.s32.totalorder %s47, %s61
      %p63 = scmp.eq.s32.totalorder %s16, 0
      %p64 = por %p62, %p63
      %s65 = ssub.s32 %s10, %s17
      %p66 = scmp.eq.s32.totalorder %s65, 0
      %s68 = sadd.s32 %s67, 1
      %s69 = scalar_select %p66, %s67, %s68
      %p72 = pneg %p66
      %p73 = scmp.eq.s32.totalorder %s10, 1
      %p74 = por %p72, %p73
      %p75 = scmp.ne.s32.totalorder %s67, %s70
      %p76 = scmp.eq.s32.totalorder %s10, 0
      %p77 = por %p75, %p76
      %p78 = scmp.ne.s32.totalorder %s67, %s70
      %p79 = scmp.eq.s32.totalorder %s15, 1
      %p80 = por %p78, %p79
      %p81 = scmp.ne.s32.totalorder %s70, %s71
      %p82 = scmp.eq.s32.totalorder %s15, 0
      %p83 = por %p81, %p82
      %p84 = scmp.ne.s32.totalorder %s70, %s71
      %p85 = scmp.eq.s32.totalorder %s16, 1
      %p86 = por %p84, %p85
      %p88 = scmp.ne.s32.totalorder %s71, %s87
      %p89 = scmp.eq.s32.totalorder %s16, 0
      %p90 = por %p88, %p89
      %s91 = ssub.s32 %s10, %s17
      %p92 = scmp.eq.s32.totalorder %s91, 0
      %s94 = sadd.s32 %s93, 1
      %s95 = scalar_select %p92, %s93, %s94
      %p98 = pneg %p92
      %p99 = scmp.eq.s32.totalorder %s10, 1
      %p100 = por %p98, %p99
      %p101 = scmp.ne.s32.totalorder %s93, %s96
      %p102 = scmp.eq.s32.totalorder %s10, 0
      %p103 = por %p101, %p102
      %p104 = scmp.ne.s32.totalorder %s93, %s96
      %p105 = scmp.eq.s32.totalorder %s15, 1
      %p106 = por %p104, %p105
      %p107 = scmp.ne.s32.totalorder %s96, %s97
      %p108 = scmp.eq.s32.totalorder %s15, 0
      %p109 = por %p107, %p108
      %p110 = scmp.ne.s32.totalorder %s96, %s97
      %p111 = scmp.eq.s32.totalorder %s16, 1
      %p112 = por %p110, %p111
      %p114 = scmp.ne.s32.totalorder %s97, %s113
      %p115 = scmp.eq.s32.totalorder %s16, 0
      %p116 = por %p114, %p115
      %p117 = scmp.le.s32.totalorder 1, %s10
      %p118 = scmp.lt.s32.totalorder %s10, 3
      %p119 = pnand %p117, %p118
      %p120 = pneg %p119
      // Predicated region
      $region9: #{conv3d_bn_lrelu.2} parent=5 // pred_check
        _
      $region10: #{conv3d_bn_lrelu.2} parent=5 // pred_check_branch
        %122 = sbr.rel (%p119) target = $region12
      $region11: #{conv3d_bn_lrelu.2} parent=5 // pred_region
        %s123 = ssub.s32 %s10, 1
        // Predicated region
        $region13: #{conv3d_bn_lrelu.2} parent=11 // pred_check
          %p124 = pneg %p57
        $region14: #{conv3d_bn_lrelu.2} parent=11 // pred_check_branch
          %126 = sbr.rel (%p124) target = $region16
        $region15: #{conv3d_bn_lrelu.2} parent=11 // pred_region
          _
        $region16: #{conv3d_bn_lrelu.2} parent=11 // pred_fallthru
          _
      $region12: #{conv3d_bn_lrelu.2} parent=5 // pred_fallthru
        _
      %p127 = scmp.lt.s32.totalorder %s10, 2
      // Predicated region
      $region17: #{conv3d_bn_lrelu.2} parent=5 // pred_check
        %p128 = pneg %p127
      $region18: #{conv3d_bn_lrelu.2} parent=5 // pred_check_branch
        %130 = sbr.rel (%p128) target = $region20
      $region19: #{conv3d_bn_lrelu.2} parent=5 // pred_region
        // Predicated region
        $region21: #{conv3d_bn_lrelu.2} parent=19 // pred_check
          %p131 = pneg %p30
        $region22: #{conv3d_bn_lrelu.2} parent=19 // pred_check_branch
          %133 = sbr.rel (%p131) target = $region24
        $region23: #{conv3d_bn_lrelu.2} parent=19 // pred_region
          %s134 = sand.u32 %s20, 1
          %s135 = sand.u32 %s20, 1
          %s136 = smul.addr %s135, 256
          %s137 = scalar_lea.vmem [#allocation2], %s136
          %s138 = smul.u32 4, %s10
          %s139 = smul.addr %s138, 4
          %s140 = scalar_lea.vmem %s0, %s139
          // Predicated region
          $region25: #{conv3d_bn_lrelu.2} parent=23 // pred_check
            _
          $region26: #{conv3d_bn_lrelu.2} parent=23 // pred_check_branch
            %142 = sbr.rel (0) target = $region28
          $region27: #{conv3d_bn_lrelu.2} parent=23 // pred_region
            // Predicated region
            $region29: #{conv3d_bn_lrelu.2} parent=27 // pred_check
              _
            $region30: #{conv3d_bn_lrelu.2} parent=27 // pred_check_branch
              %144 = sbr.rel (0) target = $region32
            $region31: #{conv3d_bn_lrelu.2} parent=27 // pred_region
              loop: start=0, step=1, limit=1
              $region33: #{conv3d_bn_lrelu.2} parent=31 // loop_pre_header
                _
              $region34: #{conv3d_bn_lrelu.2} parent=31 // loop_header
                %s146 = sphi 0, %s150
                %p147 = scmp.ge.s32.totalorder %s146, 1
                %s151 = sphi %s140, %s140
                %s152 = sphi %s137, %s137
              $region35: #{conv3d_bn_lrelu.2} parent=31 // loop_header_branch
                %149 = sbr.rel (%p147) target = $region39
              $region36: #{conv3d_bn_lrelu.2} parent=31 // loop_body
                %v153 = vld [vmem:[%s151] sm:$0xff]
                %154 = vst [vmem:[%s152] sm:$0xff] %v153
                %v155 = vld [vmem:[%s151 + $0x8] sm:$0xff]
                %156 = vst [vmem:[%s152 + $0x8] sm:$0xff] %v155
                %v157 = vld [vmem:[%s151 + $0x20] sm:$0xff]
                %158 = vst [vmem:[%s152 + $0x10] sm:$0xff] %v157
                %v159 = vld [vmem:[%s151 + $0x28] sm:$0xff]
                %160 = vst [vmem:[%s152 + $0x18] sm:$0xff] %v159
                %v161 = vld [vmem:[%s151 + $0x40] sm:$0xff]
                %162 = vst [vmem:[%s152 + $0x20] sm:$0xff] %v161
                %v163 = vld [vmem:[%s151 + $0x48] sm:$0xff]
                %164 = vst [vmem:[%s152 + $0x28] sm:$0xff] %v163
                %v165 = vld [vmem:[%s151 + $0x60] sm:$0xff]
                %166 = vst [vmem:[%s152 + $0x30] sm:$0xff] %v165
                %v167 = vld [vmem:[%s151 + $0x68] sm:$0xff]
                %168 = vst [vmem:[%s152 + $0x38] sm:$0xff] %v167
                %v169 = vld [vmem:[%s151 + $0x80] sm:$0xff]
                %170 = vst [vmem:[%s152 + $0x40] sm:$0xff] %v169
                %v171 = vld [vmem:[%s151 + $0x88] sm:$0xff]
                %172 = vst [vmem:[%s152 + $0x48] sm:$0xff] %v171
                %v173 = vld [vmem:[%s151 + $0xa0] sm:$0xff]
                %174 = vst [vmem:[%s152 + $0x50] sm:$0xff] %v173
                %v175 = vld [vmem:[%s151 + $0xa8] sm:$0xff]
                %176 = vst [vmem:[%s152 + $0x58] sm:$0xff] %v175
                %v177 = vld [vmem:[%s151 + $0xc0] sm:$0xff]
                %178 = vst [vmem:[%s152 + $0x60] sm:$0xff] %v177
                %v179 = vld [vmem:[%s151 + $0xc8] sm:$0xff]
                %180 = vst [vmem:[%s152 + $0x68] sm:$0xff] %v179
                %v181 = vld [vmem:[%s151 + $0xe0] sm:$0xff]
                %182 = vst [vmem:[%s152 + $0x70] sm:$0xff] %v181
                %v183 = vld [vmem:[%s151 + $0xe8] sm:$0xff]
                %184 = vst [vmem:[%s152 + $0x78] sm:$0xff] %v183
                %v185 = vld [vmem:[%s151 + $0x100] sm:$0xff]
                %186 = vst [vmem:[%s152 + $0x80] sm:$0xff] %v185
                %v187 = vld [vmem:[%s151 + $0x108] sm:$0xff]
                %188 = vst [vmem:[%s152 + $0x88] sm:$0xff] %v187
                %v189 = vld [vmem:[%s151 + $0x120] sm:$0xff]
                %190 = vst [vmem:[%s152 + $0x90] sm:$0xff] %v189
                %v191 = vld [vmem:[%s151 + $0x128] sm:$0xff]
                %192 = vst [vmem:[%s152 + $0x98] sm:$0xff] %v191
                %v193 = vld [vmem:[%s151 + $0x140] sm:$0xff]
                %194 = vst [vmem:[%s152 + $0xa0] sm:$0xff] %v193
                %v195 = vld [vmem:[%s151 + $0x148] sm:$0xff]
                %196 = vst [vmem:[%s152 + $0xa8] sm:$0xff] %v195
                %v197 = vld [vmem:[%s151 + $0x160] sm:$0xff]
                %198 = vst [vmem:[%s152 + $0xb0] sm:$0xff] %v197
                %v199 = vld [vmem:[%s151 + $0x168] sm:$0xff]
                %200 = vst [vmem:[%s152 + $0xb8] sm:$0xff] %v199
                %v201 = vld [vmem:[%s151 + $0x180] sm:$0xff]
                %202 = vst [vmem:[%s152 + $0xc0] sm:$0xff] %v201
                %v203 = vld [vmem:[%s151 + $0x188] sm:$0xff]
                %204 = vst [vmem:[%s152 + $0xc8] sm:$0xff] %v203
                %v205 = vld [vmem:[%s151 + $0x1a0] sm:$0xff]
                %206 = vst [vmem:[%s152 + $0xd0] sm:$0xff] %v205
                %v207 = vld [vmem:[%s151 + $0x1a8] sm:$0xff]
                %208 = vst [vmem:[%s152 + $0xd8] sm:$0xff] %v207
                %v209 = vld [vmem:[%s151 + $0x1c0] sm:$0xff]
                %210 = vst [vmem:[%s152 + $0xe0] sm:$0xff] %v209
                %v211 = vld [vmem:[%s151 + $0x1c8] sm:$0xff]
                %212 = vst [vmem:[%s152 + $0xe8] sm:$0xff] %v211
                %v213 = vld [vmem:[%s151 + $0x1e0] sm:$0xff]
                %214 = vst [vmem:[%s152 + $0xf0] sm:$0xff] %v213
                %v215 = vld [vmem:[%s151 + $0x1e8] sm:$0xff]
                %216 = vst [vmem:[%s152 + $0xf8] sm:$0xff] %v215
              $region37: #{conv3d_bn_lrelu.2} parent=31 // loop_footer
                %s150 = sadd.s32 1, %s146
              $region38: #{conv3d_bn_lrelu.2} parent=31 // loop_footer_branch
                %145 = sbr.rel target = $region34
              $region39: #{conv3d_bn_lrelu.2} parent=31 // loop_exit
                _
            $region32: #{conv3d_bn_lrelu.2} parent=27 // pred_fallthru
              _
            // Predicated region
            $region40: #{conv3d_bn_lrelu.2} parent=27 // pred_check
              _
            $region41: #{conv3d_bn_lrelu.2} parent=27 // pred_check_branch
              %218 = sbr.rel target = $region43
            $region42: #{conv3d_bn_lrelu.2} parent=27 // pred_region
              _
            $region43: #{conv3d_bn_lrelu.2} parent=27 // pred_fallthru
              _
          $region28: #{conv3d_bn_lrelu.2} parent=23 // pred_fallthru
            _
          %219 = vnop
        $region24: #{conv3d_bn_lrelu.2} parent=19 // pred_fallthru
          _
      $region20: #{conv3d_bn_lrelu.2} parent=5 // pred_fallthru
        _
      %p220 = scmp.le.s32.totalorder 1, %s10
      %p221 = scmp.lt.s32.totalorder %s10, 3
      %p222 = pnand %p220, %p221
      %p223 = pneg %p222
      // Predicated region
      $region44: #{conv3d_bn_lrelu.2} parent=5 // pred_check
        _
      $region45: #{conv3d_bn_lrelu.2} parent=5 // pred_check_branch
        %225 = sbr.rel (%p222) target = $region47
      $region46: #{conv3d_bn_lrelu.2} parent=5 // pred_region
        %s226 = ssub.s32 %s10, 1
        %s227 = sand.u32 %s23, 1
        %s228 = sand.u32 %s23, 1
        %s229 = smul.addr %s228, 256
        %s230 = scalar_lea.vmem [#allocation2], %s229
        // Predicated region
        $region48: #{conv3d_bn_lrelu.2} parent=46 // pred_check
          %p231 = pneg %p36
        $region49: #{conv3d_bn_lrelu.2} parent=46 // pred_check_branch
          %233 = sbr.rel (%p231) target = $region51
        $region50: #{conv3d_bn_lrelu.2} parent=46 // pred_region
          _
        $region51: #{conv3d_bn_lrelu.2} parent=46 // pred_fallthru
          _
        %s234 = sand.u32 %s23, 1
        %s235 = sand.u32 %s23, 1
        %s236 = smul.addr %s235, 256
        %s237 = scalar_lea.vmem [#allocation2], %s236
        %p238 = pneg %p36
        %p239 = pneg %p33
        %p240 = pneg %p57
        %p241 = pneg %p54
        %p242 = pneg %p83
        %p243 = pneg %p80
        %s244 = sand.u32 %s70, 1
        %s245 = sand.u32 %s70, 1
        %s246 = smul.addr %s245, 32
        %s247 = scalar_lea.vmem [#allocation3], %s246
        %p248 = pneg %p109
        %p249 = pneg %p106
        %p250 = scmp.lt.s32.totalorder %s15, 1
        %s251 = scalar_select %p250, %s15, 1
        %s252 = smul.addr %s251, 2
        %s253 = smul.addr %s252, 8
        %s254 = scalar_lea.vmem %s3, %s253
        %s255 = smul.u32 4, %s15
        %s256 = smul.u32 4, %s15
        %p257 = scmp.lt.s32.totalorder %s15, 1
        %s258 = scalar_select %p257, %s15, 1
        %s259 = smul.addr %s258, 2
        %s260 = smul.addr %s259, 8
        %s261 = scalar_lea.vmem %s3, %s260
        %v263 = vld [vmem:[%s1] sm:$0xf]
        %v264 = vld [vmem:[%s1 + $0x4] sm:$0xf]
        %v265 = vld [vmem:[%s230] sm:$0xff]
        %v266 = vld [vmem:[%s230 + $0x8] sm:$0xff]
        %v267 = vld [vmem:[%s230 + $0x10] sm:$0xff]
        %v268 = vld [vmem:[%s230 + $0x18] sm:$0xff]
        %v269 = vld [vmem:[%s230 + $0x20] sm:$0xff]
        %v270 = vld [vmem:[%s230 + $0x28] sm:$0xff]
        %v271 = vld [vmem:[%s230 + $0x30] sm:$0xff]
        %v272 = vld [vmem:[%s230 + $0x38] sm:$0xff]
        %v273 = vld [vmem:[%s230 + $0x40] sm:$0xff]
        %v274 = vld [vmem:[%s230 + $0x48] sm:$0xff]
        %v275 = vld [vmem:[%s230 + $0x50] sm:$0xff]
        %v276 = vld [vmem:[%s230 + $0x58] sm:$0xff]
        %v277 = vld [vmem:[%s230 + $0x60] sm:$0xff]
        %v278 = vld [vmem:[%s230 + $0x68] sm:$0xff]
        %v279 = vld [vmem:[%s230 + $0x70] sm:$0xff]
        %v280 = vld [vmem:[%s230 + $0x78] sm:$0xff]
        %v281 = vld [vmem:[%s230 + $0x80] sm:$0xff]
        %v282 = vld [vmem:[%s230 + $0x88] sm:$0xff]
        %v283 = vld [vmem:[%s230 + $0x90] sm:$0xff]
        %v284 = vld [vmem:[%s230 + $0x98] sm:$0xff]
        %v285 = vld [vmem:[%s230 + $0xa0] sm:$0xff]
        %v286 = vld [vmem:[%s230 + $0xa8] sm:$0xff]
        %v287 = vld [vmem:[%s230 + $0xb0] sm:$0xff]
        %v288 = vld [vmem:[%s230 + $0xb8] sm:$0xff]
        %v289 = vld [vmem:[%s230 + $0xc0] sm:$0xff]
        %v290 = vld [vmem:[%s230 + $0xc8] sm:$0xff]
        %v291 = vld [vmem:[%s230 + $0xd0] sm:$0xff]
        %v292 = vld [vmem:[%s230 + $0xd8] sm:$0xff]
        %v293 = vld [vmem:[%s230 + $0xe0] sm:$0xff]
        %v294 = vld [vmem:[%s230 + $0xe8] sm:$0xff]
        %v295 = vld [vmem:[%s230 + $0xf0] sm:$0xff]
        %v296 = vld [vmem:[%s230 + $0xf8] sm:$0xff]
        %v299 = vunpack.c.l.b16 %v263
        %v300 = vunpack.c.l.b16 %v264
        %v301 = vpack.c.b16 %v300, %v299
        %v335 = vunpack.c.l.b16 %v265
        %v336 = vunpack.c.h.b16 %v265
        %v337 = vunpack.c.l.b16 %v266
        %v338 = vunpack.c.h.b16 %v266
        %v339 = vunpack.c.l.b16 %v267
        %v340 = vunpack.c.h.b16 %v267
        %v341 = vunpack.c.l.b16 %v268
        %v342 = vunpack.c.h.b16 %v268
        %v343 = vunpack.c.l.b16 %v269
        %v344 = vunpack.c.h.b16 %v269
        %v345 = vunpack.c.l.b16 %v270
        %v346 = vunpack.c.h.b16 %v270
        %v347 = vunpack.c.l.b16 %v271
        %v348 = vunpack.c.h.b16 %v271
        %v349 = vunpack.c.l.b16 %v272
        %v350 = vunpack.c.h.b16 %v272
        %v351 = vunpack.c.l.b16 %v273
        %v352 = vunpack.c.h.b16 %v273
        %v353 = vunpack.c.l.b16 %v274
        %v354 = vunpack.c.h.b16 %v274
        %v355 = vunpack.c.l.b16 %v275
        %v356 = vunpack.c.h.b16 %v275
        %v357 = vunpack.c.l.b16 %v276
        %v358 = vunpack.c.h.b16 %v276
        %v359 = vunpack.c.l.b16 %v277
        %v360 = vunpack.c.h.b16 %v277
        %v361 = vunpack.c.l.b16 %v278
        %v362 = vunpack.c.h.b16 %v278
        %v363 = vunpack.c.l.b16 %v279
        %v364 = vunpack.c.h.b16 %v279
        %v365 = vunpack.c.l.b16 %v280
        %v366 = vunpack.c.h.b16 %v280
        %v367 = vunpack.c.l.b16 %v281
        %v368 = vunpack.c.h.b16 %v281
        %v369 = vunpack.c.l.b16 %v282
        %v370 = vunpack.c.h.b16 %v282
        %v371 = vunpack.c.l.b16 %v283
        %v372 = vunpack.c.h.b16 %v283
        %v373 = vunpack.c.l.b16 %v284
        %v374 = vunpack.c.h.b16 %v284
        %v375 = vunpack.c.l.b16 %v285
        %v376 = vunpack.c.h.b16 %v285
        %v377 = vunpack.c.l.b16 %v286
        %v378 = vunpack.c.h.b16 %v286
        %v379 = vunpack.c.l.b16 %v287
        %v380 = vunpack.c.h.b16 %v287
        %v381 = vunpack.c.l.b16 %v288
        %v382 = vunpack.c.h.b16 %v288
        %v383 = vunpack.c.l.b16 %v289
        %v384 = vunpack.c.h.b16 %v289
        %v385 = vunpack.c.l.b16 %v290
        %v386 = vunpack.c.h.b16 %v290
        %v387 = vunpack.c.l.b16 %v291
        %v388 = vunpack.c.h.b16 %v291
        %v389 = vunpack.c.l.b16 %v292
        %v390 = vunpack.c.h.b16 %v292
        %v391 = vunpack.c.l.b16 %v293
        %v392 = vunpack.c.h.b16 %v293
        %v393 = vunpack.c.l.b16 %v294
        %v394 = vunpack.c.h.b16 %v294
        %v395 = vunpack.c.l.b16 %v295
        %v396 = vunpack.c.h.b16 %v295
        %v397 = vunpack.c.l.b16 %v296
        %v398 = vunpack.c.h.b16 %v296
        %v399 = vpack.c.b16 %v339, %v335
        %v400 = vpack.c.b16 %v340, %v336
        %v401 = vpack.c.b16 %v341, %v337
        %v402 = vpack.c.b16 %v342, %v338
        %v403 = vpack.c.b16 %v347, %v343
        %v404 = vpack.c.b16 %v348, %v344
        %v405 = vpack.c.b16 %v349, %v345
        %v406 = vpack.c.b16 %v350, %v346
        %v407 = vpack.c.b16 %v355, %v351
        %v408 = vpack.c.b16 %v356, %v352
        %v409 = vpack.c.b16 %v357, %v353
        %v410 = vpack.c.b16 %v358, %v354
        %v411 = vpack.c.b16 %v363, %v359
        %v412 = vpack.c.b16 %v364, %v360
        %v413 = vpack.c.b16 %v365, %v361
        %v414 = vpack.c.b16 %v366, %v362
        %v415 = vpack.c.b16 %v371, %v367
        %v416 = vpack.c.b16 %v372, %v368
        %v417 = vpack.c.b16 %v373, %v369
        %v418 = vpack.c.b16 %v374, %v370
        %v419 = vpack.c.b16 %v379, %v375
        %v420 = vpack.c.b16 %v380, %v376
        %v421 = vpack.c.b16 %v381, %v377
        %v422 = vpack.c.b16 %v382, %v378
        %v423 = vpack.c.b16 %v387, %v383
        %v424 = vpack.c.b16 %v388, %v384
        %v425 = vpack.c.b16 %v389, %v385
        %v426 = vpack.c.b16 %v390, %v386
        %v427 = vpack.c.b16 %v395, %v391
        %v428 = vpack.c.b16 %v396, %v392
        %v429 = vpack.c.b16 %v397, %v393
        %v430 = vpack.c.b16 %v398, %v394
        %463 = vmatprep.subr.bf16.mxu0 %v400
        %464 = vmatpush1.bf16.msra.mxu0 %v399
        %465 = vmatprep.subr.bf16.mxu0 %v404
        %466 = vmatpush1.bf16.msra.mxu0 %v403
        %467 = vmatprep.subr.bf16.mxu0 %v408
        %468 = vmatpush1.bf16.msra.mxu0 %v407
        %469 = vmatprep.subr.bf16.mxu0 %v412
        %470 = vmatpush1.bf16.msra.mxu0 %v411
        %471 = vmatprep.subr.bf16.mxu0 %v416
        %472 = vmatpush1.bf16.msra.mxu0 %v415
        %473 = vmatprep.subr.bf16.mxu0 %v420
        %474 = vmatpush1.bf16.msra.mxu0 %v419
        %475 = vmatprep.subr.bf16.mxu0 %v424
        %476 = vmatpush1.bf16.msra.mxu0 %v423
        %477 = vmatprep.subr.bf16.mxu0 %v428
        %478 = vmatpush1.bf16.msra.mxu0 %v427
        %479 = vmatprep.subr.bf16.mxu0 0
        %480 = vmatpush1.bf16.msra.mxu0 0
        %481 = vmatprep.subr.bf16.mxu0 0
        %482 = vmatpush1.bf16.msra.mxu0 0
        %483 = vmatprep.subr.bf16.mxu0 0
        %484 = vmatpush1.bf16.msra.mxu0 0
        %485 = vmatprep.subr.bf16.mxu0 0
        %486 = vmatpush1.bf16.msra.mxu0 0
        %487 = vmatprep.subr.bf16.mxu0 0
        %488 = vmatpush1.bf16.msra.mxu0 0
        %489 = vmatprep.subr.bf16.mxu0 0
        %490 = vmatpush1.bf16.msra.mxu0 0
        %491 = vmatprep.subr.bf16.mxu0 0
        %492 = vmatpush1.bf16.msra.mxu0 0
        %493 = vmatprep.subr.bf16.mxu0 0
        %494 = vmatpush1.bf16.msra.mxu0 0
        %495 = vmatprep.mubr.bf16.mxu0 0
        %496 = vmatmul.mubr.bf16.gmra.mrb[0].mxu0 %v301
        %v497 = vpop.f32.mrb[0].mxu0
        %v498 = vadd.f32 0.0, %v497
        %v499 = vpop.f32.mrb[0].mxu0
        %v500 = vadd.f32 0.0, %v499
        %v501 = vpop.f32.mrb[0].mxu0
        %v502 = vadd.f32 0.0, %v501
        %v503 = vpop.f32.mrb[0].mxu0
        %v504 = vadd.f32 0.0, %v503
        %505 = vdwg.mxu0
        %506 = vmatprep.subr.bf16.mxu0 %v402
        %507 = vmatpush1.bf16.msra.mxu0 %v401
        %508 = vmatprep.subr.bf16.mxu0 %v406
        %509 = vmatpush1.bf16.msra.mxu0 %v405
        %510 = vmatprep.subr.bf16.mxu0 %v410
        %511 = vmatpush1.bf16.msra.mxu0 %v409
        %512 = vmatprep.subr.bf16.mxu0 %v414
        %513 = vmatpush1.bf16.msra.mxu0 %v413
        %514 = vmatprep.subr.bf16.mxu0 %v418
        %515 = vmatpush1.bf16.msra.mxu0 %v417
        %516 = vmatprep.subr.bf16.mxu0 %v422
        %517 = vmatpush1.bf16.msra.mxu0 %v421
        %518 = vmatprep.subr.bf16.mxu0 %v426
        %519 = vmatpush1.bf16.msra.mxu0 %v425
        %520 = vmatprep.subr.bf16.mxu0 %v430
        %521 = vmatpush1.bf16.msra.mxu0 %v429
        %522 = vmatprep.subr.bf16.mxu0 0
        %523 = vmatpush1.bf16.msra.mxu0 0
        %524 = vmatprep.subr.bf16.mxu0 0
        %525 = vmatpush1.bf16.msra.mxu0 0
        %526 = vmatprep.subr.bf16.mxu0 0
        %527 = vmatpush1.bf16.msra.mxu0 0
        %528 = vmatprep.subr.bf16.mxu0 0
        %529 = vmatpush1.bf16.msra.mxu0 0
        %530 = vmatprep.subr.bf16.mxu0 0
        %531 = vmatpush1.bf16.msra.mxu0 0
        %532 = vmatprep.subr.bf16.mxu0 0
        %533 = vmatpush1.bf16.msra.mxu0 0
        %534 = vmatprep.subr.bf16.mxu0 0
        %535 = vmatpush1.bf16.msra.mxu0 0
        %536 = vmatprep.subr.bf16.mxu0 0
        %537 = vmatpush1.bf16.msra.mxu0 0
        %538 = vmatprep.mubr.bf16.mxu0 0
        %539 = vmatmul.mubr.bf16.gmra.mrb[0].mxu0 %v301
        %v540 = vpop.f32.mrb[0].mxu0
        %v541 = vadd.f32 0.0, %v540
        %v542 = vpop.f32.mrb[0].mxu0
        %v543 = vadd.f32 0.0, %v542
        %v544 = vpop.f32.mrb[0].mxu0
        %v545 = vadd.f32 0.0, %v544
        %v546 = vpop.f32.mrb[0].mxu0
        %v547 = vadd.f32 0.0, %v546
        %548 = vdwg.mxu0
        %v549 = vpack.c.bf16 %v502, %v498
        %v550 = vpack.c.bf16 %v504, %v500
        %v551 = vpack.c.bf16 %v545, %v541
        %v552 = vpack.c.bf16 %v547, %v543
        %v557 = vunpack.c.l.b16 %v549
        %v558 = vunpack.c.l.b16 %v550
        %v559 = vunpack.c.l.b16 %v551
        %v560 = vunpack.c.l.b16 %v552
        %v561 = vunpack.c.h.b16 %v549
        %v562 = vunpack.c.h.b16 %v550
        %v563 = vunpack.c.h.b16 %v551
        %v564 = vunpack.c.h.b16 %v552
        %v565 = vpack.c.b16 %v558, %v557
        %v566 = vpack.c.b16 %v560, %v559
        %v567 = vpack.c.b16 %v562, %v561
        %v568 = vpack.c.b16 %v564, %v563
        %573 = vst [vmem:[%s247] sm:$0xff] %v565
        %574 = vst [vmem:[%s247 + $0x8] sm:$0xff] %v566
        %575 = vst [vmem:[%s247 + $0x10] sm:$0xff] %v567
        %576 = vst [vmem:[%s247 + $0x18] sm:$0xff] %v568
        %v577 = vadd.f32 %v498, %v500
        %v578 = vadd.f32 %v577, %v541
        %v579 = vadd.f32 %v578, %v543
        %580 = vadd.xlane.f32.xlu0 %v579
        %v581 = vpop.xlane.xlu0 %580
        %v582 = vadd.f32 %v502, %v504
        %v583 = vadd.f32 %v582, %v545
        %v584 = vadd.f32 %v583, %v547
        %585 = vadd.xlane.f32.xlu0 %v584
        %v586 = vpop.xlane.xlu0 %585
        %vm587 = vcmask 7168
        %588 = vst.msk [vmem:[%s261] sm:$0xff] %vm587, %v581
        %589 = vst.msk [vmem:[%s261 + $0x8] sm:$0xff] %vm587, %v586
        %v590 = vmul.f32 %v498, %v498
        %v591 = vmul.f32 %v500, %v500
        %v592 = vmul.f32 %v541, %v541
        %v593 = vmul.f32 %v543, %v543
        %v594 = vmul.f32 %v502, %v502
        %v595 = vmul.f32 %v504, %v504
        %v596 = vmul.f32 %v545, %v545
        %v597 = vmul.f32 %v547, %v547
        %v598 = vadd.f32 %v590, %v591
        %v599 = vadd.f32 %v598, %v592
        %v600 = vadd.f32 %v599, %v593
        %601 = vadd.xlane.f32.xlu0 %v600
        %v602 = vpop.xlane.xlu0 %601
        %v603 = vadd.f32 %v594, %v595
        %v604 = vadd.f32 %v603, %v596
        %v605 = vadd.f32 %v604, %v597
        %606 = vadd.xlane.f32.xlu0 %v605
        %v607 = vpop.xlane.xlu0 %606
        %vm608 = vcmask 15368
        %609 = vst.msk [vmem:[%s261] sm:$0xff] %vm608, %v602
        %610 = vst.msk [vmem:[%s261 + $0x8] sm:$0xff] %vm608, %v607
        %s611 = sand.u32 %s70, 1
        %s612 = sand.u32 %s70, 1
        %s613 = smul.addr %s612, 32
        %s614 = scalar_lea.vmem [#allocation3], %s613
        %p615 = scmp.lt.s32.totalorder %s15, 1
        %s616 = scalar_select %p615, %s15, 1
        %s617 = smul.addr %s616, 2
        %s618 = smul.addr %s617, 8
        %s619 = scalar_lea.vmem %s3, %s618
        // Predicated region
        $region52: #{conv3d_bn_lrelu.2} parent=46 // pred_check
          %p620 = pneg %p80
        $region53: #{conv3d_bn_lrelu.2} parent=46 // pred_check_branch
          %622 = sbr.rel (%p620) target = $region55
        $region54: #{conv3d_bn_lrelu.2} parent=46 // pred_region
          %s623 = smul.u32 4, %s15
          %s624 = smul.addr %s623, 4
          %s625 = scalar_lea.vmem %s2, %s624
          // Predicated region
          $region56: #{conv3d_bn_lrelu.2} parent=54 // pred_check
            _
          $region57: #{conv3d_bn_lrelu.2} parent=54 // pred_check_branch
            %627 = sbr.rel (0) target = $region59
          $region58: #{conv3d_bn_lrelu.2} parent=54 // pred_region
            // Predicated region
            $region60: #{conv3d_bn_lrelu.2} parent=58 // pred_check
              _
            $region61: #{conv3d_bn_lrelu.2} parent=58 // pred_check_branch
              %629 = sbr.rel (0) target = $region63
            $region62: #{conv3d_bn_lrelu.2} parent=58 // pred_region
              loop: start=0, step=1, limit=1
              $region64: #{conv3d_bn_lrelu.2} parent=62 // loop_pre_header
                _
              $region65: #{conv3d_bn_lrelu.2} parent=62 // loop_header
                %s631 = sphi 0, %s635
                %p632 = scmp.ge.s32.totalorder %s631, 1
                %s636 = sphi %s614, %s614
                %s637 = sphi %s625, %s625
              $region66: #{conv3d_bn_lrelu.2} parent=62 // loop_header_branch
                %634 = sbr.rel (%p632) target = $region70
              $region67: #{conv3d_bn_lrelu.2} parent=62 // loop_body
                %v638 = vld [vmem:[%s636] sm:$0xff]
                %639 = vst [vmem:[%s637] sm:$0xff] %v638
                %v640 = vld [vmem:[%s636 + $0x8] sm:$0xff]
                %641 = vst [vmem:[%s637 + $0x8] sm:$0xff] %v640
                %v642 = vld [vmem:[%s636 + $0x10] sm:$0xff]
                %643 = vst [vmem:[%s637 + $0x20] sm:$0xff] %v642
                %v644 = vld [vmem:[%s636 + $0x18] sm:$0xff]
                %645 = vst [vmem:[%s637 + $0x28] sm:$0xff] %v644
              $region68: #{conv3d_bn_lrelu.2} parent=62 // loop_footer
                %s635 = sadd.s32 1, %s631
              $region69: #{conv3d_bn_lrelu.2} parent=62 // loop_footer_branch
                %630 = sbr.rel target = $region65
              $region70: #{conv3d_bn_lrelu.2} parent=62 // loop_exit
                _
            $region63: #{conv3d_bn_lrelu.2} parent=58 // pred_fallthru
              _
            // Predicated region
            $region71: #{conv3d_bn_lrelu.2} parent=58 // pred_check
              _
            $region72: #{conv3d_bn_lrelu.2} parent=58 // pred_check_branch
              %647 = sbr.rel target = $region74
            $region73: #{conv3d_bn_lrelu.2} parent=58 // pred_region
              _
            $region74: #{conv3d_bn_lrelu.2} parent=58 // pred_fallthru
              _
          $region59: #{conv3d_bn_lrelu.2} parent=54 // pred_fallthru
            _
          %648 = vnop
        $region55: #{conv3d_bn_lrelu.2} parent=46 // pred_fallthru
          _
        // Predicated region
        $region75: #{conv3d_bn_lrelu.2} parent=46 // pred_check
          %p649 = pneg %p106
        $region76: #{conv3d_bn_lrelu.2} parent=46 // pred_check_branch
          %651 = sbr.rel (%p649) target = $region78
        $region77: #{conv3d_bn_lrelu.2} parent=46 // pred_region
          _
        $region78: #{conv3d_bn_lrelu.2} parent=46 // pred_fallthru
          _
      $region47: #{conv3d_bn_lrelu.2} parent=5 // pred_fallthru
        _
      %p652 = scmp.le.s32.totalorder 2, %s10
      // Predicated region
      $region79: #{conv3d_bn_lrelu.2} parent=5 // pred_check
        %p653 = pneg %p652
      $region80: #{conv3d_bn_lrelu.2} parent=5 // pred_check_branch
        %655 = sbr.rel (%p653) target = $region82
      $region81: #{conv3d_bn_lrelu.2} parent=5 // pred_region
        %s656 = ssub.s32 %s10, 2
        // Predicated region
        $region83: #{conv3d_bn_lrelu.2} parent=81 // pred_check
          %p657 = pneg %p86
        $region84: #{conv3d_bn_lrelu.2} parent=81 // pred_check_branch
          %659 = sbr.rel (%p657) target = $region86
        $region85: #{conv3d_bn_lrelu.2} parent=81 // pred_region
          %s660 = sand.u32 %s71, 1
          %s661 = sand.u32 %s71, 1
          %s662 = smul.addr %s661, 32
          %s663 = scalar_lea.vmem [#allocation3], %s662
        $region86: #{conv3d_bn_lrelu.2} parent=81 // pred_fallthru
          _
        // Predicated region
        $region87: #{conv3d_bn_lrelu.2} parent=81 // pred_check
          %p664 = pneg %p112
        $region88: #{conv3d_bn_lrelu.2} parent=81 // pred_check_branch
          %666 = sbr.rel (%p664) target = $region90
        $region89: #{conv3d_bn_lrelu.2} parent=81 // pred_region
          %p667 = scmp.lt.s32.totalorder %s16, 1
          %s668 = scalar_select %p667, %s16, 1
          %s669 = smul.addr %s668, 2
          %s670 = smul.addr %s669, 8
          %s671 = scalar_lea.vmem %s3, %s670
        $region90: #{conv3d_bn_lrelu.2} parent=81 // pred_fallthru
          _
      $region82: #{conv3d_bn_lrelu.2} parent=5 // pred_fallthru
        _
    $region6: #{conv3d_bn_lrelu.2} parent=1 // loop_footer
      %s14 = sadd.s32 1, %s10
    $region7: #{conv3d_bn_lrelu.2} parent=1 // loop_footer_branch
      %9 = sbr.rel target = $region3
    $region8: #{conv3d_bn_lrelu.2} parent=1 // loop_exit
      _

</llo_original>
